<compile_context>
chip_gen: v7x
topology: tpu7x:2x2x1
jax: 0.10.0
libtpu: 0.0.40
codegen_flags: <defaults>
</compile_context>

<pallas_src>
import functools

import jax
import jax.numpy as jnp
from jax.experimental import pallas as pl
from jax.experimental.pallas import tpu as pltpu


def _make_adv_loss_kernel(inv_b):
    """inv_b = 1/B (true batch size) baked in as a compile-time constant."""

    def kernel(x_ref, sign_ref, wgt_ref, w1_ref, b1_ref, w2r_ref, b2_ref,
               out_ref, acc_ref):
        # x_ref:   [TILE_B, D]  stacked (source ; target ; zero-pad) rows
        # sign_ref:[TILE_B, 1]  +1 for source rows, -1 for target rows
        # wgt_ref: [TILE_B, 1]  W2 per-sample weight (0 on padding rows)
        # w1_ref:  [D, H]   b1_ref: [1, H]   w2r_ref: [1, H]   b2_ref: [1, 1]
        # out_ref: [1, 1] SMEM scalar loss
        # acc_ref: [1, 1] VMEM f32 accumulator (resident across grid steps)
        i = pl.program_id(0)

        @pl.when(i == 0)
        def _():
            acc_ref[...] = jnp.zeros_like(acc_ref)

        # --- discriminator forward (one pass over stacked src/tgt) ---------
        h = jnp.dot(x_ref[...], w1_ref[...],
                    preferred_element_type=jnp.float32)          # MXU
        h = jnp.maximum(h + b1_ref[...], 0.0)                    # ReLU (VPU)
        # Output layer as VPU mul + lane reduce instead of an N=1 MXU matmul.
        logit = jnp.sum(h * w2r_ref[...], axis=-1, keepdims=True)
        logit = logit + b2_ref[...]                               # [TILE_B, 1]

        # --- fused weighted log-sigmoid loss term ---------------------------
        # source rows: log(sigmoid(l)) ; target rows: log(1 - sigmoid(l))
        #            = log(sigmoid(-l))  -> select via the sign column.
        z = sign_ref[...] * logit
        # Stable log-sigmoid: min(z, 0) - log(1 + exp(-|z|))
        log_sig = jnp.minimum(z, 0.0) - jnp.log(1.0 + jnp.exp(-jnp.abs(z)))
        acc_ref[...] += jnp.sum(wgt_ref[...] * log_sig, keepdims=True)

        @pl.when(i == pl.num_programs(0) - 1)
        def _():
            # Both original means are over B elements -> divide the fused sum
            # by the true B, negate, store as a scalar to SMEM.
            out_ref[0, 0] = -inv_b * jnp.sum(acc_ref[...])

    return kernel


def adversarial_loss(source, target, w2_vec, params, *, tile_b=512):
    """source/target: [B, D] f32; w2_vec: [B] f32; params: MLP discriminator.

    Returns the scalar adversarial loss (same semantics as the PyTorch module,
    with the external `model` replaced by a 2-layer MLP discriminator).
    """
    B, D = source.shape
    H = params["w1"].shape[1]

    # Stack source + target -> one [2B, D] operand, one discriminator pass.
    x = jnp.concatenate([source, target], axis=0).astype(jnp.float32)
    sign = jnp.concatenate(
        [jnp.ones((B, 1), jnp.float32), -jnp.ones((B, 1), jnp.float32)], axis=0)
    w2_col = w2_vec.reshape(B, 1).astype(jnp.float32)   # W2.unsqueeze(dim=1)
    wgt = jnp.concatenate([w2_col, w2_col], axis=0)     # reused for both terms

    rows = 2 * B
    # Tile over the stacked batch; keep TILE_B a multiple of 8 (sublanes) and
    # small enough that 2 pipeline buffers * TILE_B * D * 4B fits the 32 MiB
    # scoped-VMEM budget (v7x-safe; v5e/v6e have more headroom).
    tile = max(8, min(tile_b, rows))
    tile = ((tile + 7) // 8) * 8
    rows_pad = ((rows + tile - 1) // tile) * tile
    if rows_pad != rows:
        pad = rows_pad - rows
        x = jnp.concatenate([x, jnp.zeros((pad, D), jnp.float32)], axis=0)
        sign = jnp.concatenate([sign, jnp.ones((pad, 1), jnp.float32)], axis=0)
        # zero weight -> padded rows contribute nothing to the (true-B) mean
        wgt = jnp.concatenate([wgt, jnp.zeros((pad, 1), jnp.float32)], axis=0)
    num_tiles = rows_pad // tile

    w1 = params["w1"].astype(jnp.float32)               # [D, H]
    b1 = params["b1"].reshape(1, H).astype(jnp.float32)
    w2_row = params["w2"].reshape(1, H).astype(jnp.float32)  # row layout for VPU reduce
    b2 = params["b2"].reshape(1, 1).astype(jnp.float32)

    vspec = lambda shape, imap: pl.BlockSpec(shape, imap,
                                             memory_space=pltpu.VMEM)

    out = pl.pallas_call(
        _make_adv_loss_kernel(1.0 / B),
        out_shape=jax.ShapeDtypeStruct((1, 1), jnp.float32),
        grid=(num_tiles,),
        in_specs=[
            vspec((tile, D), lambda i: (i, 0)),   # stacked features (tiled)
            vspec((tile, 1), lambda i: (i, 0)),   # sign column (tiled)
            vspec((tile, 1), lambda i: (i, 0)),   # W2 weights (tiled)
            vspec((D, H),    lambda i: (0, 0)),   # w1 (resident)
            vspec((1, H),    lambda i: (0, 0)),   # b1 (resident)
            vspec((1, H),    lambda i: (0, 0)),   # w2 row (resident)
            vspec((1, 1),    lambda i: (0, 0)),   # b2 (resident)
        ],
        out_specs=pl.BlockSpec((1, 1), lambda i: (0, 0),
                               memory_space=pltpu.SMEM),
        scratch_shapes=[pltpu.VMEM((1, 1), jnp.float32)],
        compiler_params=pltpu.CompilerParams(
            dimension_semantics=("arbitrary",),   # accumulator carried across grid
            vmem_limit_bytes=32 * 1024 * 1024),
    )(x, sign, wgt, w1, b1, w2_row, b2)
    return out[0, 0]


def _reference(source, target, w2_vec, params):
    # Mirrors the PyTorch module literally (sigmoid -> log), for parity check.
    def disc(x):
        h = jnp.maximum(x @ params["w1"] + params["b1"], 0.0)
        return h @ params["w2"] + params["b2"]
    p_s = jax.nn.sigmoid(disc(source))
    p_t = jax.nn.sigmoid(disc(target))
    w2 = w2_vec[:, None]
    return -(jnp.mean(w2 * jnp.log(p_s)) + jnp.mean(w2 * jnp.log(1.0 - p_t)))


if __name__ == "__main__":
    # TODO(synk): the PyTorch forward takes an arbitrary external discriminator
    # `model`; a deterministic 2-layer MLP stands in for it here.
    # Note: in production, choose D/H as multiples of 128 for full lane
    # occupancy; the demo keeps small shapes consistent with the module.
    B, D, H = 8, 32, 32
    key = jax.random.PRNGKey(0)
    k_src, k_tgt, k_w2, k_w1, k_b1, k_wo, k_bo = jax.random.split(key, 7)

    source = jax.random.normal(k_src, (B, D), dtype=jnp.float32)
    target = jax.random.normal(k_tgt, (B, D), dtype=jnp.float32)
    # Per-sample importance weights (strictly positive).
    w2_vec = jax.nn.softmax(jax.random.normal(k_w2, (B,), dtype=jnp.float32)) * B

    params = {
        "w1": jax.random.normal(k_w1, (D, H), dtype=jnp.float32) * (1.0 / jnp.sqrt(D)),
        "b1": jax.random.normal(k_b1, (1, H), dtype=jnp.float32) * 0.01,
        "w2": jax.random.normal(k_wo, (H, 1), dtype=jnp.float32) * (1.0 / jnp.sqrt(H)),
        "b2": jax.random.normal(k_bo, (1, 1), dtype=jnp.float32) * 0.01,
    }

    # tile_b=8 -> 2 grid steps at the demo size, exercising the pipelined
    # init / accumulate / finalize path.
    loss = jax.block_until_ready(
        adversarial_loss(source, target, w2_vec, params, tile_b=8))
    ref = jax.block_until_ready(_reference(source, target, w2_vec, params))

    assert jnp.isfinite(loss), "loss is not finite"
    assert jnp.allclose(loss, ref, rtol=1e-5, atol=1e-5), (loss, ref)
    print("KERNEL_OK")
</pallas_src>

<mosaic_0001>
module attributes {stable_mosaic.version = 11 : i64} {
  func.func @kernel(%arg0: i32, %arg1: memref<8x32xf32, #tpu.memory_space<vmem>>, %arg2: memref<8x1xf32, #tpu.memory_space<vmem>>, %arg3: memref<8x1xf32, #tpu.memory_space<vmem>>, %arg4: memref<32x32xf32, #tpu.memory_space<vmem>>, %arg5: memref<1x32xf32, #tpu.memory_space<vmem>>, %arg6: memref<1x32xf32, #tpu.memory_space<vmem>>, %arg7: memref<1x1xf32, #tpu.memory_space<vmem>>, %arg8: memref<1x1xf32, #tpu.memory_space<smem>>, %arg9: memref<1x1xf32, #tpu.memory_space<vmem>>) attributes {dimension_semantics = [#tpu.dimension_semantics<arbitrary>], iteration_bounds = array<i64: 2>, scalar_prefetch = 0 : i64, scratch_operands = 1 : i64, tpu.core_type = #tpu.core_type<tc>, window_params = [{transform_indices = @transform_0, window_bounds = array<i64: 8, 32>}, {transform_indices = @transform_1, window_bounds = array<i64: 8, 1>}, {transform_indices = @transform_2, window_bounds = array<i64: 8, 1>}, {pipeline_mode = #tpu.pipeline_mode<synchronous>, transform_indices = @transform_3, window_bounds = array<i64: 32, 32>}, {pipeline_mode = #tpu.pipeline_mode<synchronous>, transform_indices = @transform_4, window_bounds = array<i64: 1, 32>}, {pipeline_mode = #tpu.pipeline_mode<synchronous>, transform_indices = @transform_5, window_bounds = array<i64: 1, 32>}, {pipeline_mode = #tpu.pipeline_mode<synchronous>, transform_indices = @transform_6, window_bounds = array<i64: 1, 1>}, {transform_indices = @transform_7, window_bounds = array<i64: 1, 1>}]} {
    %c0_i32 = arith.constant 0 : i32
    %0 = arith.cmpi eq, %arg0, %c0_i32 : i32
    %1 = arith.extui %0 : i1 to i32
    %c0_i32_0 = arith.constant 0 : i32
    %2 = arith.cmpi ne, %1, %c0_i32_0 : i32
    scf.if %2 {
      %cst_25 = arith.constant 0.000000e+00 : f32
      %44 = vector.broadcast %cst_25 : f32 to vector<1x1xf32>
      %c0_26 = arith.constant 0 : index
      %c0_27 = arith.constant 0 : index
      %45 = vector.load %arg9[%c0_26, %c0_27] : memref<1x1xf32, #tpu.memory_space<vmem>>, vector<1x1xf32>
      tpu.vector_store %arg9[%c0_26, %c0_27], %44 {strides = array<i32>} : memref<1x1xf32, #tpu.memory_space<vmem>>, vector<1x1xf32>,
    } else {
    }
    %c0 = arith.constant 0 : index
    %c0_1 = arith.constant 0 : index
    %3 = vector.load %arg1[%c0, %c0_1] : memref<8x32xf32, #tpu.memory_space<vmem>>, vector<8x32xf32>
    %c0_2 = arith.constant 0 : index
    %c0_3 = arith.constant 0 : index
    %4 = vector.load %arg4[%c0_2, %c0_3] : memref<32x32xf32, #tpu.memory_space<vmem>>, vector<32x32xf32>
    %cst = arith.constant dense<0.000000e+00> : vector<8x32xf32>
    %5 = tpu.matmul %3, %4, %cst {dimension_numbers = #tpu.dot_dimension_numbers<[1], [0], [0], [1], [0, 0, 1, 1], [], []>} : vector<8x32xf32>, vector<32x32xf32>, vector<8x32xf32> -> vector<8x32xf32>
    %c0_4 = arith.constant 0 : index
    %c0_5 = arith.constant 0 : index
    %6 = vector.load %arg5[%c0_4, %c0_5] : memref<1x32xf32, #tpu.memory_space<vmem>>, vector<1x32xf32>
    %7 = vector.broadcast %6 : vector<1x32xf32> to vector<8x32xf32>
    %8 = arith.addf %5, %7 : vector<8x32xf32>
    %cst_6 = arith.constant 0.000000e+00 : f32
    %9 = vector.broadcast %cst_6 : f32 to vector<8x32xf32>
    %10 = arith.maximumf %8, %9 : vector<8x32xf32>
    %c0_7 = arith.constant 0 : index
    %c0_8 = arith.constant 0 : index
    %11 = vector.load %arg6[%c0_7, %c0_8] : memref<1x32xf32, #tpu.memory_space<vmem>>, vector<1x32xf32>
    %12 = vector.broadcast %11 : vector<1x32xf32> to vector<8x32xf32>
    %13 = arith.mulf %10, %12 : vector<8x32xf32>
    %cst_9 = arith.constant dense<0.000000e+00> : vector<8xf32>
    %14 = vector.multi_reduction <add>, %13, %cst_9 [1] : vector<8x32xf32> to vector<8xf32>
    %15 = vector.shape_cast %14 : vector<8xf32> to vector<8x1xf32>
    %c0_10 = arith.constant 0 : index
    %c0_11 = arith.constant 0 : index
    %16 = vector.load %arg7[%c0_10, %c0_11] : memref<1x1xf32, #tpu.memory_space<vmem>>, vector<1x1xf32>
    %17 = vector.broadcast %16 : vector<1x1xf32> to vector<8x1xf32>
    %18 = arith.addf %15, %17 : vector<8x1xf32>
    %c0_12 = arith.constant 0 : index
    %c0_13 = arith.constant 0 : index
    %19 = vector.load %arg2[%c0_12, %c0_13] : memref<8x1xf32, #tpu.memory_space<vmem>>, vector<8x1xf32>
    %20 = arith.mulf %19, %18 : vector<8x1xf32>
    %cst_14 = arith.constant 0.000000e+00 : f32
    %21 = vector.broadcast %cst_14 : f32 to vector<8x1xf32>
    %22 = arith.minimumf %20, %21 : vector<8x1xf32>
    %23 = math.absf %20 : vector<8x1xf32>
    %cst_15 = arith.constant 0.000000e+00 : f32
    %24 = vector.broadcast %cst_15 : f32 to vector<8x1xf32>
    %25 = arith.subf %24, %23 : vector<8x1xf32>
    %26 = math.exp %25 : vector<8x1xf32>
    %cst_16 = arith.constant 1.000000e+00 : f32
    %27 = vector.broadcast %cst_16 : f32 to vector<8x1xf32>
    %28 = arith.addf %27, %26 : vector<8x1xf32>
    %29 = math.log %28 : vector<8x1xf32>
    %30 = arith.subf %22, %29 : vector<8x1xf32>
    %c0_17 = arith.constant 0 : index
    %c0_18 = arith.constant 0 : index
    %31 = vector.load %arg9[%c0_17, %c0_18] : memref<1x1xf32, #tpu.memory_space<vmem>>, vector<1x1xf32>
    %c0_19 = arith.constant 0 : index
    %c0_20 = arith.constant 0 : index
    %32 = vector.load %arg3[%c0_19, %c0_20] : memref<8x1xf32, #tpu.memory_space<vmem>>, vector<8x1xf32>
    %33 = arith.mulf %32, %30 : vector<8x1xf32>
    %34 = vector.shape_cast %33 : vector<8x1xf32> to vector<1x8x1xf32>
    %cst_21 = arith.constant dense<0.000000e+00> : vector<1xf32>
    %35 = vector.multi_reduction <add>, %34, %cst_21 [1, 2] : vector<1x8x1xf32> to vector<1xf32>
    %36 = vector.shape_cast %35 : vector<1xf32> to vector<1x1x1xf32>
    %37 = vector.extract %36[0, 0, 0] : f32 from vector<1x1x1xf32>
    %38 = vector.broadcast %37 : f32 to vector<1x1xf32>
    %39 = arith.addf %31, %38 : vector<1x1xf32>
    %c0_22 = arith.constant 0 : index
    %c0_23 = arith.constant 0 : index
    %40 = vector.load %arg9[%c0_22, %c0_23] : memref<1x1xf32, #tpu.memory_space<vmem>>, vector<1x1xf32>
    tpu.vector_store %arg9[%c0_22, %c0_23], %39 {strides = array<i32>} : memref<1x1xf32, #tpu.memory_space<vmem>>, vector<1x1xf32>,
    %c1_i32 = arith.constant 1 : i32
    %41 = arith.cmpi eq, %arg0, %c1_i32 : i32
    %42 = arith.extui %41 : i1 to i32
    %c0_i32_24 = arith.constant 0 : i32
    %43 = arith.cmpi ne, %42, %c0_i32_24 : i32
    scf.if %43 {
      %c0_25 = arith.constant 0 : index
      %c0_26 = arith.constant 0 : index
      %44 = vector.load %arg9[%c0_25, %c0_26] : memref<1x1xf32, #tpu.memory_space<vmem>>, vector<1x1xf32>
      %45 = vector.shape_cast %44 : vector<1x1xf32> to vector<1x1x1xf32>
      %cst_27 = arith.constant dense<0.000000e+00> : vector<1xf32>
      %46 = vector.multi_reduction <add>, %45, %cst_27 [1, 2] : vector<1x1x1xf32> to vector<1xf32>
      %47 = vector.shape_cast %46 : vector<1xf32> to vector<1x1x1xf32>
      %48 = vector.extract %47[0, 0, 0] : f32 from vector<1x1x1xf32>
      %cst_28 = arith.constant -1.250000e-01 : f32
      %49 = arith.mulf %cst_28, %48 : f32
      %c0_29 = arith.constant 0 : index
      %c0_30 = arith.constant 0 : index
      %50 = memref.load %arg8[%c0_29, %c0_30] : memref<1x1xf32, #tpu.memory_space<smem>>
      memref.store %49, %arg8[%c0_29, %c0_30] : memref<1x1xf32, #tpu.memory_space<smem>>
    } else {
    }
    return
  }
  func.func @transform_0(%arg0: i32) -> (i32, i32) {
    %c0_i32 = arith.constant 0 : i32
    %c0_i32_0 = arith.constant 0 : i32
    return %arg0, %c0_i32 : i32, i32
  }
  func.func @transform_1(%arg0: i32) -> (i32, i32) {
    %c0_i32 = arith.constant 0 : i32
    %c0_i32_0 = arith.constant 0 : i32
    return %arg0, %c0_i32 : i32, i32
  }
  func.func @transform_2(%arg0: i32) -> (i32, i32) {
    %c0_i32 = arith.constant 0 : i32
    %c0_i32_0 = arith.constant 0 : i32
    return %arg0, %c0_i32 : i32, i32
  }
  func.func @transform_3(%arg0: i32) -> (i32, i32) {
    %c0_i32 = arith.constant 0 : i32
    %c0_i32_0 = arith.constant 0 : i32
    %c0_i32_1 = arith.constant 0 : i32
    return %c0_i32, %c0_i32_0 : i32, i32
  }
  func.func @transform_4(%arg0: i32) -> (i32, i32) {
    %c0_i32 = arith.constant 0 : i32
    %c0_i32_0 = arith.constant 0 : i32
    %c0_i32_1 = arith.constant 0 : i32
    return %c0_i32, %c0_i32_0 : i32, i32
  }
  func.func @transform_5(%arg0: i32) -> (i32, i32) {
    %c0_i32 = arith.constant 0 : i32
    %c0_i32_0 = arith.constant 0 : i32
    %c0_i32_1 = arith.constant 0 : i32
    return %c0_i32, %c0_i32_0 : i32, i32
  }
  func.func @transform_6(%arg0: i32) -> (i32, i32) {
    %c0_i32 = arith.constant 0 : i32
    %c0_i32_0 = arith.constant 0 : i32
    %c0_i32_1 = arith.constant 0 : i32
    return %c0_i32, %c0_i32_0 : i32, i32
  }
  func.func @transform_7(%arg0: i32) -> (i32, i32) {
    %c0_i32 = arith.constant 0 : i32
    %c0_i32_0 = arith.constant 0 : i32
    %c0_i32_1 = arith.constant 0 : i32
    return %c0_i32, %c0_i32_0 : i32, i32
  }
}

</mosaic_0001>

<llo_original>
// kernel: tpu_custom_call.1
$region0: #{tpu_custom_call.1}
  #allocation0 [shape = 'u32[]', space=smem, size = 0x4, offset = 0x4, fixed_abs, tag = 'smem constant byte address 0x4 - core index']
  #allocation1 [shape = 'u32[144,128]{1,0:T(1,128)}', space=vmem, size = 0x12000, scoped, tag = 'internal scratch']
  #allocation2 [shape = 'f32[1,1]{1,0:T(1,128)}', space=vmem, size = 0x200, scoped, tag = 'scratch operand']
  #allocation3 [shape = 'f32[1,1]{1,0:T(1,128)S(1)}', space=vmem, size = 0x200, scoped, tag = 'scoped memory for tpu_custom_call.1']
  %s0 = inlined_call_operand.vmem [shape: f32[16,32], index: 0, kind: input, shape index: {}]
  %s1 = inlined_call_operand.vmem [shape: f32[16,1], index: 1, kind: input, shape index: {}]
  %s2 = inlined_call_operand.vmem [shape: f32[16,1], index: 2, kind: input, shape index: {}]
  %s3 = inlined_call_operand.vmem [shape: f32[32,32], index: 3, kind: input, shape index: {}]
  %s4 = inlined_call_operand.vmem [shape: f32[1,32], index: 4, kind: input, shape index: {}]
  %s5 = inlined_call_operand.vmem [shape: f32[1,32], index: 5, kind: input, shape index: {}]
  %s6 = inlined_call_operand.<no memory space> [shape: f32[1,1], index: 6, kind: input, shape index: {}]
  %s7 = inlined_call_operand.hbm [shape: f32[1,1], index: 7, kind: output, shape index: {}]
  %s8 = sld [smem:[#allocation0]]
  $region69: #{tpu_custom_call.1} parent=0
    _
  %s10 = ssub.s32 1, %s8
  %s11 = scalar_select 0, %s10, %s8
  %v12 = vstv %s6
  %13 = vst [vmem:[#allocation3] sm:$0x1] %v12
  $region1: #{tpu_custom_call.1} parent=0
    #allocation4 [shape = 'u8[512]{0}', space=smem, size = 0x200, scoped, tag = 'output window, operand 0, single buffered']
    #allocation5 [shape = 's32[2]{0}', space=sflag, size = 0x8, scoped, tag = 'scoped memory for tpu_custom_call.1']
    %14 = vsyncpa [#allocation5], 0
    loop: start=0, step=1, limit=4
    $region2: #{tpu_custom_call.1} parent=1 // loop_pre_header
      _
    $region3: #{tpu_custom_call.1} parent=1 // loop_header
      %s16 = sphi 0, %s20
      %p17 = scmp.ge.s32.totalorder %s16, 4
      %s26 = sphi 0, %s28
      %s29 = sphi 0, %s26
      %s30 = sphi 0, %s29
      %s46 = sphi 0, %s30
      %s52 = sphi 0, %s54
      %s55 = sphi 0, %s52
      %s56 = sphi 0, %s55
      %s72 = sphi 0, %s56
      %s78 = sphi 0, %s80
      %s81 = sphi 0, %s78
      %s82 = sphi 0, %s81
      %s98 = sphi 0, %s82
      %s102 = sphi 0, %s102
      %s104 = sphi 0, %s102
      %s105 = sphi 0, %s104
      %s119 = sphi 0, %s105
      %s123 = sphi 0, %s123
      %s125 = sphi 0, %s123
      %s126 = sphi 0, %s125
      %s140 = sphi 0, %s126
      %s144 = sphi 0, %s144
      %s146 = sphi 0, %s144
      %s147 = sphi 0, %s146
      %s161 = sphi 0, %s147
      %s165 = sphi 0, %s165
      %s167 = sphi 0, %s165
      %s168 = sphi 0, %s167
      %s182 = sphi 0, %s168
      %s186 = sphi 0, %s186
      %s188 = sphi 0, %s186
      %s189 = sphi 0, %s188
      %s203 = sphi 0, %s189
    $region4: #{tpu_custom_call.1} parent=1 // loop_header_branch
      %19 = sbr.rel (%p17) target = $region8
    $region5: #{tpu_custom_call.1} parent=1 // loop_body
      %s21 = ssub.s32 %s16, 1
      %s22 = ssub.s32 %s16, 2
      %s23 = sadd.s32 %s16, 1
      %s24 = ssub.s32 %s16, %s23
      %p25 = scmp.eq.s32.totalorder %s24, 0
      %s27 = sadd.s32 %s26, 1
      %s28 = scalar_select %p25, %s26, %s27
      %p31 = pneg %p25
      %p32 = scmp.eq.s32.totalorder %s16, 1
      %p33 = por %p31, %p32
      %p34 = scmp.ne.s32.totalorder %s26, %s29
      %p35 = scmp.eq.s32.totalorder %s16, 0
      %p36 = por %p34, %p35
      %p37 = scmp.ne.s32.totalorder %s26, %s29
      %p38 = scmp.eq.s32.totalorder %s21, 1
      %p39 = por %p37, %p38
      %p40 = scmp.ne.s32.totalorder %s29, %s30
      %p41 = scmp.eq.s32.totalorder %s21, 0
      %p42 = por %p40, %p41
      %p43 = scmp.ne.s32.totalorder %s29, %s30
      %p44 = scmp.eq.s32.totalorder %s22, 1
      %p45 = por %p43, %p44
      %p47 = scmp.ne.s32.totalorder %s30, %s46
      %p48 = scmp.eq.s32.totalorder %s22, 0
      %p49 = por %p47, %p48
      %s50 = ssub.s32 %s16, %s23
      %p51 = scmp.eq.s32.totalorder %s50, 0
      %s53 = sadd.s32 %s52, 1
      %s54 = scalar_select %p51, %s52, %s53
      %p57 = pneg %p51
      %p58 = scmp.eq.s32.totalorder %s16, 1
      %p59 = por %p57, %p58
      %p60 = scmp.ne.s32.totalorder %s52, %s55
      %p61 = scmp.eq.s32.totalorder %s16, 0
      %p62 = por %p60, %p61
      %p63 = scmp.ne.s32.totalorder %s52, %s55
      %p64 = scmp.eq.s32.totalorder %s21, 1
      %p65 = por %p63, %p64
      %p66 = scmp.ne.s32.totalorder %s55, %s56
      %p67 = scmp.eq.s32.totalorder %s21, 0
      %p68 = por %p66, %p67
      %p69 = scmp.ne.s32.totalorder %s55, %s56
      %p70 = scmp.eq.s32.totalorder %s22, 1
      %p71 = por %p69, %p70
      %p73 = scmp.ne.s32.totalorder %s56, %s72
      %p74 = scmp.eq.s32.totalorder %s22, 0
      %p75 = por %p73, %p74
      %s76 = ssub.s32 %s16, %s23
      %p77 = scmp.eq.s32.totalorder %s76, 0
      %s79 = sadd.s32 %s78, 1
      %s80 = scalar_select %p77, %s78, %s79
      %p83 = pneg %p77
      %p84 = scmp.eq.s32.totalorder %s16, 1
      %p85 = por %p83, %p84
      %p86 = scmp.ne.s32.totalorder %s78, %s81
      %p87 = scmp.eq.s32.totalorder %s16, 0
      %p88 = por %p86, %p87
      %p89 = scmp.ne.s32.totalorder %s78, %s81
      %p90 = scmp.eq.s32.totalorder %s21, 1
      %p91 = por %p89, %p90
      %p92 = scmp.ne.s32.totalorder %s81, %s82
      %p93 = scmp.eq.s32.totalorder %s21, 0
      %p94 = por %p92, %p93
      %p95 = scmp.ne.s32.totalorder %s81, %s82
      %p96 = scmp.eq.s32.totalorder %s22, 1
      %p97 = por %p95, %p96
      %p99 = scmp.ne.s32.totalorder %s82, %s98
      %p100 = scmp.eq.s32.totalorder %s22, 0
      %p101 = por %p99, %p100
      %s103 = sadd.s32 %s102, 1
      %p106 = scmp.eq.s32.totalorder %s16, 1
      %p107 = scmp.ne.s32.totalorder %s102, %s104
      %p108 = scmp.eq.s32.totalorder %s16, 0
      %p109 = por %p107, %p108
      %p110 = scmp.ne.s32.totalorder %s102, %s104
      %p111 = scmp.eq.s32.totalorder %s21, 1
      %p112 = por %p110, %p111
      %p113 = scmp.ne.s32.totalorder %s104, %s105
      %p114 = scmp.eq.s32.totalorder %s21, 0
      %p115 = por %p113, %p114
      %p116 = scmp.ne.s32.totalorder %s104, %s105
      %p117 = scmp.eq.s32.totalorder %s22, 1
      %p118 = por %p116, %p117
      %p120 = scmp.ne.s32.totalorder %s105, %s119
      %p121 = scmp.eq.s32.totalorder %s22, 0
      %p122 = por %p120, %p121
      %s124 = sadd.s32 %s123, 1
      %p127 = scmp.eq.s32.totalorder %s16, 1
      %p128 = scmp.ne.s32.totalorder %s123, %s125
      %p129 = scmp.eq.s32.totalorder %s16, 0
      %p130 = por %p128, %p129
      %p131 = scmp.ne.s32.totalorder %s123, %s125
      %p132 = scmp.eq.s32.totalorder %s21, 1
      %p133 = por %p131, %p132
      %p134 = scmp.ne.s32.totalorder %s125, %s126
      %p135 = scmp.eq.s32.totalorder %s21, 0
      %p136 = por %p134, %p135
      %p137 = scmp.ne.s32.totalorder %s125, %s126
      %p138 = scmp.eq.s32.totalorder %s22, 1
      %p139 = por %p137, %p138
      %p141 = scmp.ne.s32.totalorder %s126, %s140
      %p142 = scmp.eq.s32.totalorder %s22, 0
      %p143 = por %p141, %p142
      %s145 = sadd.s32 %s144, 1
      %p148 = scmp.eq.s32.totalorder %s16, 1
      %p149 = scmp.ne.s32.totalorder %s144, %s146
      %p150 = scmp.eq.s32.totalorder %s16, 0
      %p151 = por %p149, %p150
      %p152 = scmp.ne.s32.totalorder %s144, %s146
      %p153 = scmp.eq.s32.totalorder %s21, 1
      %p154 = por %p152, %p153
      %p155 = scmp.ne.s32.totalorder %s146, %s147
      %p156 = scmp.eq.s32.totalorder %s21, 0
      %p157 = por %p155, %p156
      %p158 = scmp.ne.s32.totalorder %s146, %s147
      %p159 = scmp.eq.s32.totalorder %s22, 1
      %p160 = por %p158, %p159
      %p162 = scmp.ne.s32.totalorder %s147, %s161
      %p163 = scmp.eq.s32.totalorder %s22, 0
      %p164 = por %p162, %p163
      %s166 = sadd.s32 %s165, 1
      %p169 = scmp.eq.s32.totalorder %s16, 1
      %p170 = scmp.ne.s32.totalorder %s165, %s167
      %p171 = scmp.eq.s32.totalorder %s16, 0
      %p172 = por %p170, %p171
      %p173 = scmp.ne.s32.totalorder %s165, %s167
      %p174 = scmp.eq.s32.totalorder %s21, 1
      %p175 = por %p173, %p174
      %p176 = scmp.ne.s32.totalorder %s167, %s168
      %p177 = scmp.eq.s32.totalorder %s21, 0
      %p178 = por %p176, %p177
      %p179 = scmp.ne.s32.totalorder %s167, %s168
      %p180 = scmp.eq.s32.totalorder %s22, 1
      %p181 = por %p179, %p180
      %p183 = scmp.ne.s32.totalorder %s168, %s182
      %p184 = scmp.eq.s32.totalorder %s22, 0
      %p185 = por %p183, %p184
      %s187 = sadd.s32 %s186, 1
      %p190 = scmp.eq.s32.totalorder %s16, 1
      %p191 = scmp.ne.s32.totalorder %s186, %s188
      %p192 = scmp.eq.s32.totalorder %s16, 0
      %p193 = por %p191, %p192
      %p194 = scmp.ne.s32.totalorder %s186, %s188
      %p195 = scmp.eq.s32.totalorder %s21, 1
      %p196 = por %p194, %p195
      %p197 = scmp.ne.s32.totalorder %s188, %s189
      %p198 = scmp.eq.s32.totalorder %s21, 0
      %p199 = por %p197, %p198
      %p200 = scmp.ne.s32.totalorder %s188, %s189
      %p201 = scmp.eq.s32.totalorder %s22, 1
      %p202 = por %p200, %p201
      %p204 = scmp.ne.s32.totalorder %s189, %s203
      %p205 = scmp.eq.s32.totalorder %s22, 0
      %p206 = por %p204, %p205
      %p207 = scmp.le.s32.totalorder 1, %s16
      %p208 = scmp.lt.s32.totalorder %s16, 3
      %p209 = pnand %p207, %p208
      %p210 = pneg %p209
      // Predicated region
      $region9: #{tpu_custom_call.1} parent=5 // pred_check
        _
      $region10: #{tpu_custom_call.1} parent=5 // pred_check_branch
        %212 = sbr.rel (%p209) target = $region12
      $region11: #{tpu_custom_call.1} parent=5 // pred_region
        %s213 = ssub.s32 %s16, 1
        // Predicated region
        $region13: #{tpu_custom_call.1} parent=11 // pred_check
          %p214 = pneg %p115
        $region14: #{tpu_custom_call.1} parent=11 // pred_check_branch
          %216 = sbr.rel (%p214) target = $region16
        $region15: #{tpu_custom_call.1} parent=11 // pred_region
          _
        $region16: #{tpu_custom_call.1} parent=11 // pred_fallthru
          _
        // Predicated region
        $region17: #{tpu_custom_call.1} parent=11 // pred_check
          %p217 = pneg %p136
        $region18: #{tpu_custom_call.1} parent=11 // pred_check_branch
          %219 = sbr.rel (%p217) target = $region20
        $region19: #{tpu_custom_call.1} parent=11 // pred_region
          _
        $region20: #{tpu_custom_call.1} parent=11 // pred_fallthru
          _
        // Predicated region
        $region21: #{tpu_custom_call.1} parent=11 // pred_check
          %p220 = pneg %p157
        $region22: #{tpu_custom_call.1} parent=11 // pred_check_branch
          %222 = sbr.rel (%p220) target = $region24
        $region23: #{tpu_custom_call.1} parent=11 // pred_region
          _
        $region24: #{tpu_custom_call.1} parent=11 // pred_fallthru
          _
        // Predicated region
        $region25: #{tpu_custom_call.1} parent=11 // pred_check
          %p223 = pneg %p178
        $region26: #{tpu_custom_call.1} parent=11 // pred_check_branch
          %225 = sbr.rel (%p223) target = $region28
        $region27: #{tpu_custom_call.1} parent=11 // pred_region
          _
        $region28: #{tpu_custom_call.1} parent=11 // pred_fallthru
          _
      $region12: #{tpu_custom_call.1} parent=5 // pred_fallthru
        _
      %p226 = scmp.lt.s32.totalorder %s16, 2
      // Predicated region
      $region29: #{tpu_custom_call.1} parent=5 // pred_check
        %p227 = pneg %p226
      $region30: #{tpu_custom_call.1} parent=5 // pred_check_branch
        %229 = sbr.rel (%p227) target = $region32
      $region31: #{tpu_custom_call.1} parent=5 // pred_region
        // Predicated region
        $region33: #{tpu_custom_call.1} parent=31 // pred_check
          %p230 = pneg %p36
        $region34: #{tpu_custom_call.1} parent=31 // pred_check_branch
          %232 = sbr.rel (%p230) target = $region36
        $region35: #{tpu_custom_call.1} parent=31 // pred_region
          %p233 = scmp.lt.s32.totalorder %s16, 1
          %s234 = scalar_select %p233, %s16, 1
          %s235 = smul.addr %s234, 8
          %s236 = scalar_lea.vmem %s0, %s235
        $region36: #{tpu_custom_call.1} parent=31 // pred_fallthru
          _
        // Predicated region
        $region37: #{tpu_custom_call.1} parent=31 // pred_check
          %p237 = pneg %p62
        $region38: #{tpu_custom_call.1} parent=31 // pred_check_branch
          %239 = sbr.rel (%p237) target = $region40
        $region39: #{tpu_custom_call.1} parent=31 // pred_region
          %p240 = scmp.lt.s32.totalorder %s16, 1
          %s241 = scalar_select %p240, %s16, 1
          %s242 = smul.addr %s241, 8
          %s243 = scalar_lea.vmem %s1, %s242
        $region40: #{tpu_custom_call.1} parent=31 // pred_fallthru
          _
        // Predicated region
        $region41: #{tpu_custom_call.1} parent=31 // pred_check
          %p244 = pneg %p88
        $region42: #{tpu_custom_call.1} parent=31 // pred_check_branch
          %246 = sbr.rel (%p244) target = $region44
        $region43: #{tpu_custom_call.1} parent=31 // pred_region
          %p247 = scmp.lt.s32.totalorder %s16, 1
          %s248 = scalar_select %p247, %s16, 1
          %s249 = smul.addr %s248, 8
          %s250 = scalar_lea.vmem %s2, %s249
        $region44: #{tpu_custom_call.1} parent=31 // pred_fallthru
          _
      $region32: #{tpu_custom_call.1} parent=5 // pred_fallthru
        _
      %p251 = scmp.le.s32.totalorder 1, %s16
      %p252 = scmp.lt.s32.totalorder %s16, 3
      %p253 = pnand %p251, %p252
      %p254 = pneg %p253
      // Predicated region
      $region45: #{tpu_custom_call.1} parent=5 // pred_check
        _
      $region46: #{tpu_custom_call.1} parent=5 // pred_check_branch
        %256 = sbr.rel (%p253) target = $region48
      $region47: #{tpu_custom_call.1} parent=5 // pred_region
        %s257 = ssub.s32 %s16, 1
        %p258 = scmp.lt.s32.totalorder %s21, 1
        %s259 = scalar_select %p258, %s21, 1
        %s260 = smul.addr %s259, 8
        %s261 = scalar_lea.vmem %s0, %s260
        %p262 = pneg %p42
        %p263 = pneg %p39
        %p264 = scmp.lt.s32.totalorder %s21, 1
        %s265 = scalar_select %p264, %s21, 1
        %s266 = smul.addr %s265, 8
        %s267 = scalar_lea.vmem %s1, %s266
        %p268 = pneg %p68
        %p269 = pneg %p65
        %p270 = scmp.lt.s32.totalorder %s21, 1
        %s271 = scalar_select %p270, %s21, 1
        %s272 = smul.addr %s271, 8
        %s273 = scalar_lea.vmem %s2, %s272
        %p274 = pneg %p94
        %p275 = pneg %p91
        %p276 = pneg %p115
        %p277 = pneg %p112
        %p278 = pneg %p136
        %p279 = pneg %p133
        %p280 = pneg %p157
        %p281 = pneg %p154
        %p282 = pneg %p178
        %p283 = pneg %p175
        %p284 = pneg %p199
        %p285 = pneg %p196
        %p286 = scmp.lt.s32.totalorder %s21, 1
        %s287 = scalar_select %p286, %s21, 1
        %s288 = smul.addr %s287, 8
        %s289 = scalar_lea.vmem %s0, %s288
        %p290 = scmp.lt.s32.totalorder %s21, 1
        %s291 = scalar_select %p290, %s21, 1
        %s292 = smul.addr %s291, 8
        %s293 = scalar_lea.vmem %s1, %s292
        %p294 = scmp.lt.s32.totalorder %s21, 1
        %s295 = scalar_select %p294, %s21, 1
        %s296 = smul.addr %s295, 8
        %s297 = scalar_lea.vmem %s2, %s296
        %p298 = scmp.eq.s32.totalorder %s21, 0
        // Predicated region
        $region49: #{tpu_custom_call.1} parent=47 // pred_check
          %p299 = pneg %p298
        $region50: #{tpu_custom_call.1} parent=47 // pred_check_branch
          %301 = sbr.rel (%p299) target = $region52
        $region51: #{tpu_custom_call.1} parent=47 // pred_region
          %vm302 = vcmask 0
          %303 = vst.msk [vmem:[#allocation2] sm:$0x1] %vm302, 0.0
        $region52: #{tpu_custom_call.1} parent=47 // pred_fallthru
          _
        %v304 = vld [vmem:[%s289] sm:$0xff]
        %v305 = vld [vmem:[%s3] sm:$0xff]
        %v306 = vld [vmem:[%s3 + $0x8] sm:$0xff]
        %v307 = vld [vmem:[%s3 + $0x10] sm:$0xff]
        %v308 = vld [vmem:[%s3 + $0x18] sm:$0xff]
        %v309 = vld [vmem:[%s4] sm:$0x1]
        %v311 = vlaneseq
        %v312 = vshrl.u32 %v311, 7
        %v313 = vsub.s32 0, %v312
        %v314 = vrot.slane %v309, %v313
        %vm316 = vcmask 261120
        %v318 = vsel %vm316, %v304, 0
        %320 = vmatprep.subr.mxu0 0.0
        %321 = vmatpush1.msra.mxu0 %v305
        %322 = vmatprep.subr.mxu0 0.0
        %323 = vmatpush1.msra.mxu0 %v306
        %324 = vmatprep.subr.mxu0 0.0
        %325 = vmatpush1.msra.mxu0 %v307
        %326 = vmatprep.subr.mxu0 0.0
        %327 = vmatpush1.msra.mxu0 %v308
        %328 = vmatprep.subr.mxu0 0.0
        %329 = vmatpush1.msra.mxu0 0.0
        %330 = vmatprep.subr.mxu0 0.0
        %331 = vmatpush1.msra.mxu0 0.0
        %332 = vmatprep.subr.mxu0 0.0
        %333 = vmatpush1.msra.mxu0 0.0
        %334 = vmatprep.subr.mxu0 0.0
        %335 = vmatpush1.msra.mxu0 0.0
        %336 = vmatprep.subr.mxu0 0.0
        %337 = vmatpush1.msra.mxu0 0.0
        %338 = vmatprep.subr.mxu0 0.0
        %339 = vmatpush1.msra.mxu0 0.0
        %340 = vmatprep.subr.mxu0 0.0
        %341 = vmatpush1.msra.mxu0 0.0
        %342 = vmatprep.subr.mxu0 0.0
        %343 = vmatpush1.msra.mxu0 0.0
        %344 = vmatprep.subr.mxu0 0.0
        %345 = vmatpush1.msra.mxu0 0.0
        %346 = vmatprep.subr.mxu0 0.0
        %347 = vmatpush1.msra.mxu0 0.0
        %348 = vmatprep.subr.mxu0 0.0
        %349 = vmatpush1.msra.mxu0 0.0
        %350 = vmatprep.subr.mxu0 0.0
        %351 = vmatpush1.msra.mxu0 0.0
        %352 = vmatprep.subr.mxu0 0.0
        %353 = vmatpush1.msra.mxu0 0.0
        %354 = vmatprep.subr.mxu0 0.0
        %355 = vmatpush1.msra.mxu0 0.0
        %356 = vmatprep.subr.mxu0 0.0
        %357 = vmatpush1.msra.mxu0 0.0
        %358 = vmatprep.subr.mxu0 0.0
        %359 = vmatpush1.msra.mxu0 0.0
        %360 = vmatprep.subr.mxu0 0.0
        %361 = vmatpush1.msra.mxu0 0.0
        %362 = vmatprep.subr.mxu0 0.0
        %363 = vmatpush1.msra.mxu0 0.0
        %364 = vmatprep.subr.mxu0 0.0
        %365 = vmatpush1.msra.mxu0 0.0
        %366 = vmatprep.subr.mxu0 0.0
        %367 = vmatpush1.msra.mxu0 0.0
        %368 = vmatprep.subr.mxu0 0.0
        %369 = vmatpush1.msra.mxu0 0.0
        %370 = vmatprep.subr.mxu0 0.0
        %371 = vmatpush1.msra.mxu0 0.0
        %372 = vmatprep.subr.mxu0 0.0
        %373 = vmatpush1.msra.mxu0 0.0
        %374 = vmatprep.subr.mxu0 0.0
        %375 = vmatpush1.msra.mxu0 0.0
        %376 = vmatprep.subr.mxu0 0.0
        %377 = vmatpush1.msra.mxu0 0.0
        %378 = vmatprep.subr.mxu0 0.0
        %379 = vmatpush1.msra.mxu0 0.0
        %380 = vmatprep.subr.mxu0 0.0
        %381 = vmatpush1.msra.mxu0 0.0
        %382 = vmatprep.subr.mxu0 0.0
        %383 = vmatpush1.msra.mxu0 0.0
        %384 = vmatprep.mubr.f32.mxu0 0.0
        %385 = vmatmul.mubr.f32.gmra.mrb[0].mxu0 %v318
        %v386 = vpop.f32.mrb[0].mxu0
        %v387 = vadd.f32 %v314, %v386
        %v388 = vpop.f32.mrb[0].mxu0
        %389 = vdwg.mxu0
        %v390 = vmax.f32 %v387, 0.0
        %v391 = vld [vmem:[%s5] sm:$0x1]
        %v393 = vlaneseq
        %v394 = vshrl.u32 %v393, 7
        %v395 = vsub.s32 0, %v394
        %v396 = vrot.slane %v391, %v395
        %v398 = vmul.f32 %v390, %v396
        %v399 = vsel %vm316, %v398, 0.0
        %400 = vadd.xlane.f32.xlu0 %v399
        %v401 = vpop.xlane.xlu0 %400
        %v402 = vld [vmem:[#allocation3] sm:$0x1]
        %v404 = vlaneseq
        %v405 = vshrl.u32 %v404, 7
        %v406 = vsub.s32 0, %v405
        %v407 = vrot.slane %v402, %v406
        %v409 = vadd.f32 %v401, %v407
        %v410 = vld [vmem:[%s293] sm:$0xff]
        %v411 = vmul.f32 %v410, %v409
        %v412 = vmin.f32 %v411, 0.0
        %v413 = vand.u32 2147483647, %v411
        %v414 = vsub.f32 0.0, %v413
        %v415 = vmul.f32 %v414, 1.442695
        %v416 = vpow.pop %v415
        %v417 = vadd.f32 %v416, 1.0
        %v418 = vlog2.pop %v417
        %v419 = vmul.f32 %v418, 0.6931472
        %v420 = vsub.f32 %v412, %v419
        %v421 = vld [vmem:[#allocation2] sm:$0x1]
        %v422 = vld [vmem:[%s297] sm:$0xff]
        %v423 = vmul.f32 %v422, %v420
        %vm424 = vcmask 7168
        %v425 = vsel %vm424, %v423, 0.0
        %426 = vadd.xlane.f32.xlu0 %v425
        %v427 = vpop.xlane.xlu0 %426
        %v428 = vrot.slane %v427, 4
        %v429 = vadd.f32 %v427, %v428
        %v430 = vrot.slane %v429, 2
        %v431 = vadd.f32 %v429, %v430
        %v432 = vrot.slane %v431, 1
        %v433 = vadd.f32 %v431, %v432
        %s434 = vtos %v433
        %v435 = vstv %s434
        %v436 = vadd.f32 %v421, %v435
        %vm437 = vcmask 0
        %438 = vst.msk [vmem:[#allocation2] sm:$0x1] %vm437, %v436
        %p439 = scmp.eq.s32.totalorder %s21, 1
        // Predicated region
        $region53: #{tpu_custom_call.1} parent=47 // pred_check
          %p440 = pneg %p439
        $region54: #{tpu_custom_call.1} parent=47 // pred_check_branch
          %442 = sbr.rel (%p440) target = $region56
        $region55: #{tpu_custom_call.1} parent=47 // pred_region
          %v443 = vld [vmem:[#allocation2] sm:$0x1]
          %v444 = vadd.f32 %v443, 0.0
          %s445 = vtos %v444
          %s446 = smul.f32 %s445, -0.125
          %s447 = scalar_lea.smem [#allocation4], 0
          %448 = sst [smem:[%s447]] %s446
        $region56: #{tpu_custom_call.1} parent=47 // pred_fallthru
          _
        // Predicated region
        $region57: #{tpu_custom_call.1} parent=47 // pred_check
          %p449 = pneg %p196
        $region58: #{tpu_custom_call.1} parent=47 // pred_check_branch
          %451 = sbr.rel (%p449) target = $region60
        $region59: #{tpu_custom_call.1} parent=47 // pred_region
          %s453 = ssub.s32 16, 16
          %454 = vsyncadd [#allocation5], %s453
          %457 = dma.smem_to_hbm [#allocation4], 16, %s7, [#allocation5]
        $region60: #{tpu_custom_call.1} parent=47 // pred_fallthru
          _
        // Predicated region
        $region61: #{tpu_custom_call.1} parent=47 // pred_check
          %p458 = pneg %p196
        $region62: #{tpu_custom_call.1} parent=47 // pred_check_branch
          %460 = sbr.rel (%p458) target = $region64
        $region63: #{tpu_custom_call.1} parent=47 // pred_region
          %461 = dma.done [#allocation5], 16
        $region64: #{tpu_custom_call.1} parent=47 // pred_fallthru
          _
        %462 = sfence
      $region48: #{tpu_custom_call.1} parent=5 // pred_fallthru
        _
      %p463 = scmp.le.s32.totalorder 2, %s16
      // Predicated region
      $region65: #{tpu_custom_call.1} parent=5 // pred_check
        %p464 = pneg %p463
      $region66: #{tpu_custom_call.1} parent=5 // pred_check_branch
        %466 = sbr.rel (%p464) target = $region68
      $region67: #{tpu_custom_call.1} parent=5 // pred_region
        %s467 = ssub.s32 %s16, 2
      $region68: #{tpu_custom_call.1} parent=5 // pred_fallthru
        _
    $region6: #{tpu_custom_call.1} parent=1 // loop_footer
      %s20 = sadd.s32 1, %s16
    $region7: #{tpu_custom_call.1} parent=1 // loop_footer_branch
      %15 = sbr.rel target = $region3
    $region8: #{tpu_custom_call.1} parent=1 // loop_exit
      _
    %468 = vsyncpa [#allocation5], 1
    %s469 = scalar_lea.sflag [#allocation5], 1
    %470 = vsyncpa %s469, 1

</llo_original>
